<compile_context>
chip_gen: v7x
topology: tpu7x:2x2x1
jax: 0.10.0
libtpu: 0.0.40
codegen_flags: <defaults>
</compile_context>

<pallas_src>
import functools

import jax
import jax.numpy as jnp
from jax.experimental import pallas as pl
from jax.experimental.pallas import tpu as pltpu


def _dft_matrices(n: int, scale: float = 1.0):
    """Stacked [real, imag, real+imag] forward DFT matrices of size n."""
    k = jnp.arange(n, dtype=jnp.float32)[:, None]
    m = jnp.arange(n, dtype=jnp.float32)[None, :]
    ang = -2.0 * jnp.pi * k * m / float(n)
    fr = jnp.cos(ang) * scale
    fi = jnp.sin(ang) * scale
    return jnp.stack([fr, fi, fr + fi]).astype(jnp.float32)  # (3, n, n)


def _ft2_kernel(fh_ref, fw_ref, x_ref, y_ref, *, bt, h, w):
    # Constant DFT matrices (re-used across grid steps; block index is fixed).
    fhr, fhi, fhs = fh_ref[0], fh_ref[1], fh_ref[2]          # (H, H)
    fwr, fwi, fws = fw_ref[0], fw_ref[1], fw_ref[2]          # (W, W)  (delta^2 folded in)
    cdt = fh_ref.dtype

    # Fold the whole batch tile into the M dimension of stage A.
    xr = x_ref[0].reshape(bt * h, w)                          # (Bt*H, W)
    xi = x_ref[1].reshape(bt * h, w)
    xs = xr + xi

    # Stage A: DFT along W (right-multiply by scaled F_W), Gauss 3-mult.
    m1 = jnp.dot(xr, fwr, preferred_element_type=jnp.float32)
    m2 = jnp.dot(xi, fwi, preferred_element_type=jnp.float32)
    m3 = jnp.dot(xs, fws, preferred_element_type=jnp.float32)
    tr = (m1 - m2).reshape(bt, h, w).astype(cdt)              # real
    ti = (m3 - m1 - m2).reshape(bt, h, w).astype(cdt)         # imag

    # Stage B: DFT along H (left-multiply by F_H), per image, Gauss 3-mult.
    for b in range(bt):
        trb = tr[b]
        tib = ti[b]
        tsb = trb + tib
        n1 = jnp.dot(fhr, trb, preferred_element_type=jnp.float32)
        n2 = jnp.dot(fhi, tib, preferred_element_type=jnp.float32)
        n3 = jnp.dot(fhs, tsb, preferred_element_type=jnp.float32)
        y_ref[0, b] = n1 - n2
        y_ref[1, b] = n3 - n1 - n2


def ft2_forward(x: jax.Array, delta: float, *, block_b: int | None = None,
                use_bf16: bool = False) -> jax.Array:
    """y = fft2(x) * delta**2 for x shaped (B, H, W, 2) with (real, imag) last."""
    assert x.ndim == 4 and x.shape[-1] == 2
    B, H, W, _ = x.shape
    orig_dtype = x.dtype
    compute_dtype = jnp.bfloat16 if use_bf16 else jnp.float32

    # Choose the batch tile: fold enough images per grid step to make the
    # stage-A matmul tall, but stay well inside VMEM and leave grid steps for
    # megacore when the batch is large.
    if block_b is None:
        max_bt_vmem = max(1, (8 * 1024 * 1024) // (32 * H * W))
        bt_cap = max(1, min(B, max(1, 512 // max(H, 1)), max_bt_vmem))
        block_b = max(d for d in range(1, bt_cap + 1) if B % d == 0)
    Bt = int(block_b)
    assert B % Bt == 0, "block_b must divide the batch size"
    grid = (B // Bt,)

    # Packed (real, imag) planes: a single relayout instead of 2 slices + stack.
    x2 = jnp.transpose(x, (3, 0, 1, 2)).astype(compute_dtype)   # (2, B, H, W)

    # Constant DFT matrices; delta**2 folded into the W-side matrices.
    fh = _dft_matrices(H).astype(compute_dtype)                  # (3, H, H)
    fw = _dft_matrices(W, scale=float(delta) ** 2).astype(compute_dtype)  # (3, W, W)

    kernel = functools.partial(_ft2_kernel, bt=Bt, h=H, w=W)

    # VMEM management: constants + double-buffered in/out tiles.
    itemsize = 2 if use_bf16 else 4
    est_vmem = (itemsize * 3 * (H * H + W * W)          # DFT matrices
                + (itemsize + 4) * 2 * 2 * Bt * H * W   # x (in dtype) + y (f32), 2x buffered
                )
    cp_kwargs = {"dimension_semantics": ("parallel",)}
    if est_vmem > 12 * (1 << 20):
        cp_kwargs["vmem_limit_bytes"] = int(min(2 * est_vmem, 64 * (1 << 20)))

    y2 = pl.pallas_call(
        kernel,
        out_shape=jax.ShapeDtypeStruct((2, B, H, W), jnp.float32),
        grid_spec=pltpu.PrefetchScalarGridSpec(
            num_scalar_prefetch=0,
            grid=grid,
            in_specs=[
                pl.BlockSpec((3, H, H), lambda i: (0, 0, 0)),          # F_H (const)
                pl.BlockSpec((3, W, W), lambda i: (0, 0, 0)),          # F_W (const, scaled)
                pl.BlockSpec((2, Bt, H, W), lambda i: (0, i, 0, 0)),   # x (re, im)
            ],
            out_specs=pl.BlockSpec((2, Bt, H, W), lambda i: (0, i, 0, 0)),
        ),
        compiler_params=pltpu.CompilerParams(**cp_kwargs),
    )(fh, fw, x2)

    # Back to the PyTorch layout (B, H, W, 2): one relayout, cast to input dtype.
    return jnp.transpose(y2, (1, 2, 3, 0)).astype(orig_dtype)


if __name__ == "__main__":
    key = jax.random.PRNGKey(0)
    B, H, W = 2, 16, 16
    delta = 0.5

    x = jax.random.normal(key, (B, H, W, 2), dtype=jnp.float32)

    y = ft2_forward(x, delta)
    y = jax.block_until_ready(y)

    # Reference: jnp.fft.fft2 (same semantics as old torch.fft, signal_ndim=2,
    # non-normalized) scaled by delta**2.
    x_c = x[..., 0] + 1j * x[..., 1]
    ref = jnp.fft.fft2(x_c, axes=(-2, -1)) * (delta ** 2)
    assert y.shape == x.shape and y.dtype == x.dtype
    assert jnp.allclose(y[..., 0], ref.real, atol=1e-3, rtol=1e-3)
    assert jnp.allclose(y[..., 1], ref.imag, atol=1e-3, rtol=1e-3)

    print("KERNEL_OK")
</pallas_src>

<mosaic_0001>
module attributes {stable_mosaic.version = 11 : i64} {
  func.func @_ft2_kernel(%arg0: i32, %arg1: memref<3x16x16xf32, #tpu.memory_space<vmem>>, %arg2: memref<3x16x16xf32, #tpu.memory_space<vmem>>, %arg3: memref<2x2x16x16xf32, #tpu.memory_space<vmem>>, %arg4: memref<2x2x16x16xf32, #tpu.memory_space<vmem>>) attributes {dimension_semantics = [#tpu.dimension_semantics<parallel>], iteration_bounds = array<i64: 1>, scalar_prefetch = 0 : i64, scratch_operands = 0 : i64, tpu.core_type = #tpu.core_type<tc>, window_params = [{pipeline_mode = #tpu.pipeline_mode<synchronous>, transform_indices = @transform_0, window_bounds = array<i64: 3, 16, 16>}, {pipeline_mode = #tpu.pipeline_mode<synchronous>, transform_indices = @transform_1, window_bounds = array<i64: 3, 16, 16>}, {transform_indices = @transform_2, window_bounds = array<i64: 2, 2, 16, 16>}, {transform_indices = @transform_3, window_bounds = array<i64: 2, 2, 16, 16>}]} {
    %c0 = arith.constant 0 : index
    %c0_0 = arith.constant 0 : index
    %c0_1 = arith.constant 0 : index
    %0 = vector.load %arg1[%c0, %c0_0, %c0_1] : memref<3x16x16xf32, #tpu.memory_space<vmem>>, vector<1x16x16xf32>
    %1 = vector.shape_cast %0 : vector<1x16x16xf32> to vector<16x16xf32>
    %c1 = arith.constant 1 : index
    %c0_2 = arith.constant 0 : index
    %c0_3 = arith.constant 0 : index
    %2 = vector.load %arg1[%c1, %c0_2, %c0_3] : memref<3x16x16xf32, #tpu.memory_space<vmem>>, vector<1x16x16xf32>
    %3 = vector.shape_cast %2 : vector<1x16x16xf32> to vector<16x16xf32>
    %c2 = arith.constant 2 : index
    %c0_4 = arith.constant 0 : index
    %c0_5 = arith.constant 0 : index
    %4 = vector.load %arg1[%c2, %c0_4, %c0_5] : memref<3x16x16xf32, #tpu.memory_space<vmem>>, vector<1x16x16xf32>
    %5 = vector.shape_cast %4 : vector<1x16x16xf32> to vector<16x16xf32>
    %c0_6 = arith.constant 0 : index
    %c0_7 = arith.constant 0 : index
    %c0_8 = arith.constant 0 : index
    %6 = vector.load %arg2[%c0_6, %c0_7, %c0_8] : memref<3x16x16xf32, #tpu.memory_space<vmem>>, vector<1x16x16xf32>
    %7 = vector.shape_cast %6 : vector<1x16x16xf32> to vector<16x16xf32>
    %c1_9 = arith.constant 1 : index
    %c0_10 = arith.constant 0 : index
    %c0_11 = arith.constant 0 : index
    %8 = vector.load %arg2[%c1_9, %c0_10, %c0_11] : memref<3x16x16xf32, #tpu.memory_space<vmem>>, vector<1x16x16xf32>
    %9 = vector.shape_cast %8 : vector<1x16x16xf32> to vector<16x16xf32>
    %c2_12 = arith.constant 2 : index
    %c0_13 = arith.constant 0 : index
    %c0_14 = arith.constant 0 : index
    %10 = vector.load %arg2[%c2_12, %c0_13, %c0_14] : memref<3x16x16xf32, #tpu.memory_space<vmem>>, vector<1x16x16xf32>
    %11 = vector.shape_cast %10 : vector<1x16x16xf32> to vector<16x16xf32>
    %c0_15 = arith.constant 0 : index
    %c0_16 = arith.constant 0 : index
    %c0_17 = arith.constant 0 : index
    %c0_18 = arith.constant 0 : index
    %12 = vector.load %arg3[%c0_15, %c0_16, %c0_17, %c0_18] : memref<2x2x16x16xf32, #tpu.memory_space<vmem>>, vector<1x2x16x16xf32>
    %13 = vector.shape_cast %12 : vector<1x2x16x16xf32> to vector<2x16x16xf32>
    %14 = vector.shape_cast %13 : vector<2x16x16xf32> to vector<32x16xf32>
    %c1_19 = arith.constant 1 : index
    %c0_20 = arith.constant 0 : index
    %c0_21 = arith.constant 0 : index
    %c0_22 = arith.constant 0 : index
    %15 = vector.load %arg3[%c1_19, %c0_20, %c0_21, %c0_22] : memref<2x2x16x16xf32, #tpu.memory_space<vmem>>, vector<1x2x16x16xf32>
    %16 = vector.shape_cast %15 : vector<1x2x16x16xf32> to vector<2x16x16xf32>
    %17 = vector.shape_cast %16 : vector<2x16x16xf32> to vector<32x16xf32>
    %18 = arith.addf %14, %17 : vector<32x16xf32>
    %cst = arith.constant dense<0.000000e+00> : vector<32x16xf32>
    %19 = tpu.matmul %14, %7, %cst {dimension_numbers = #tpu.dot_dimension_numbers<[1], [0], [0], [1], [0, 0, 1, 1], [], []>} : vector<32x16xf32>, vector<16x16xf32>, vector<32x16xf32> -> vector<32x16xf32>
    %cst_23 = arith.constant dense<0.000000e+00> : vector<32x16xf32>
    %20 = tpu.matmul %17, %9, %cst_23 {dimension_numbers = #tpu.dot_dimension_numbers<[1], [0], [0], [1], [0, 0, 1, 1], [], []>} : vector<32x16xf32>, vector<16x16xf32>, vector<32x16xf32> -> vector<32x16xf32>
    %cst_24 = arith.constant dense<0.000000e+00> : vector<32x16xf32>
    %21 = tpu.matmul %18, %11, %cst_24 {dimension_numbers = #tpu.dot_dimension_numbers<[1], [0], [0], [1], [0, 0, 1, 1], [], []>} : vector<32x16xf32>, vector<16x16xf32>, vector<32x16xf32> -> vector<32x16xf32>
    %22 = arith.subf %19, %20 : vector<32x16xf32>
    %23 = vector.shape_cast %22 : vector<32x16xf32> to vector<2x16x16xf32>
    %24 = arith.subf %21, %19 : vector<32x16xf32>
    %25 = arith.subf %24, %20 : vector<32x16xf32>
    %26 = vector.shape_cast %25 : vector<32x16xf32> to vector<2x16x16xf32>
    %27 = vector.extract_strided_slice %23 {offsets = [0, 0, 0], sizes = [1, 16, 16], strides = [1, 1, 1]} : vector<2x16x16xf32> to vector<1x16x16xf32>
    %28 = vector.shape_cast %27 : vector<1x16x16xf32> to vector<16x16xf32>
    %29 = vector.extract_strided_slice %26 {offsets = [0, 0, 0], sizes = [1, 16, 16], strides = [1, 1, 1]} : vector<2x16x16xf32> to vector<1x16x16xf32>
    %30 = vector.shape_cast %29 : vector<1x16x16xf32> to vector<16x16xf32>
    %31 = arith.addf %28, %30 : vector<16x16xf32>
    %cst_25 = arith.constant dense<0.000000e+00> : vector<16x16xf32>
    %32 = tpu.matmul %1, %28, %cst_25 {dimension_numbers = #tpu.dot_dimension_numbers<[1], [0], [0], [1], [0, 0, 1, 1], [], []>} : vector<16x16xf32>, vector<16x16xf32>, vector<16x16xf32> -> vector<16x16xf32>
    %cst_26 = arith.constant dense<0.000000e+00> : vector<16x16xf32>
    %33 = tpu.matmul %3, %30, %cst_26 {dimension_numbers = #tpu.dot_dimension_numbers<[1], [0], [0], [1], [0, 0, 1, 1], [], []>} : vector<16x16xf32>, vector<16x16xf32>, vector<16x16xf32> -> vector<16x16xf32>
    %cst_27 = arith.constant dense<0.000000e+00> : vector<16x16xf32>
    %34 = tpu.matmul %5, %31, %cst_27 {dimension_numbers = #tpu.dot_dimension_numbers<[1], [0], [0], [1], [0, 0, 1, 1], [], []>} : vector<16x16xf32>, vector<16x16xf32>, vector<16x16xf32> -> vector<16x16xf32>
    %35 = arith.subf %32, %33 : vector<16x16xf32>
    %c0_28 = arith.constant 0 : index
    %c0_29 = arith.constant 0 : index
    %c0_30 = arith.constant 0 : index
    %c0_31 = arith.constant 0 : index
    %36 = vector.load %arg4[%c0_28, %c0_29, %c0_30, %c0_31] : memref<2x2x16x16xf32, #tpu.memory_space<vmem>>, vector<1x1x16x16xf32>
    %37 = vector.shape_cast %36 : vector<1x1x16x16xf32> to vector<16x16xf32>
    %38 = vector.shape_cast %35 : vector<16x16xf32> to vector<1x1x16x16xf32>
    tpu.vector_store %arg4[%c0_28, %c0_29, %c0_30, %c0_31], %38 {strides = array<i32>} : memref<2x2x16x16xf32, #tpu.memory_space<vmem>>, vector<1x1x16x16xf32>,
    %39 = arith.subf %34, %32 : vector<16x16xf32>
    %40 = arith.subf %39, %33 : vector<16x16xf32>
    %c1_32 = arith.constant 1 : index
    %c0_33 = arith.constant 0 : index
    %c0_34 = arith.constant 0 : index
    %c0_35 = arith.constant 0 : index
    %41 = vector.load %arg4[%c1_32, %c0_33, %c0_34, %c0_35] : memref<2x2x16x16xf32, #tpu.memory_space<vmem>>, vector<1x1x16x16xf32>
    %42 = vector.shape_cast %41 : vector<1x1x16x16xf32> to vector<16x16xf32>
    %43 = vector.shape_cast %40 : vector<16x16xf32> to vector<1x1x16x16xf32>
    tpu.vector_store %arg4[%c1_32, %c0_33, %c0_34, %c0_35], %43 {strides = array<i32>} : memref<2x2x16x16xf32, #tpu.memory_space<vmem>>, vector<1x1x16x16xf32>,
    %44 = vector.extract_strided_slice %23 {offsets = [1, 0, 0], sizes = [1, 16, 16], strides = [1, 1, 1]} : vector<2x16x16xf32> to vector<1x16x16xf32>
    %45 = vector.shape_cast %44 : vector<1x16x16xf32> to vector<16x16xf32>
    %46 = vector.extract_strided_slice %26 {offsets = [1, 0, 0], sizes = [1, 16, 16], strides = [1, 1, 1]} : vector<2x16x16xf32> to vector<1x16x16xf32>
    %47 = vector.shape_cast %46 : vector<1x16x16xf32> to vector<16x16xf32>
    %48 = arith.addf %45, %47 : vector<16x16xf32>
    %cst_36 = arith.constant dense<0.000000e+00> : vector<16x16xf32>
    %49 = tpu.matmul %1, %45, %cst_36 {dimension_numbers = #tpu.dot_dimension_numbers<[1], [0], [0], [1], [0, 0, 1, 1], [], []>} : vector<16x16xf32>, vector<16x16xf32>, vector<16x16xf32> -> vector<16x16xf32>
    %cst_37 = arith.constant dense<0.000000e+00> : vector<16x16xf32>
    %50 = tpu.matmul %3, %47, %cst_37 {dimension_numbers = #tpu.dot_dimension_numbers<[1], [0], [0], [1], [0, 0, 1, 1], [], []>} : vector<16x16xf32>, vector<16x16xf32>, vector<16x16xf32> -> vector<16x16xf32>
    %cst_38 = arith.constant dense<0.000000e+00> : vector<16x16xf32>
    %51 = tpu.matmul %5, %48, %cst_38 {dimension_numbers = #tpu.dot_dimension_numbers<[1], [0], [0], [1], [0, 0, 1, 1], [], []>} : vector<16x16xf32>, vector<16x16xf32>, vector<16x16xf32> -> vector<16x16xf32>
    %52 = arith.subf %49, %50 : vector<16x16xf32>
    %c0_39 = arith.constant 0 : index
    %c1_40 = arith.constant 1 : index
    %c0_41 = arith.constant 0 : index
    %c0_42 = arith.constant 0 : index
    %53 = vector.load %arg4[%c0_39, %c1_40, %c0_41, %c0_42] : memref<2x2x16x16xf32, #tpu.memory_space<vmem>>, vector<1x1x16x16xf32>
    %54 = vector.shape_cast %53 : vector<1x1x16x16xf32> to vector<16x16xf32>
    %55 = vector.shape_cast %52 : vector<16x16xf32> to vector<1x1x16x16xf32>
    tpu.vector_store %arg4[%c0_39, %c1_40, %c0_41, %c0_42], %55 {strides = array<i32>} : memref<2x2x16x16xf32, #tpu.memory_space<vmem>>, vector<1x1x16x16xf32>,
    %56 = arith.subf %51, %49 : vector<16x16xf32>
    %57 = arith.subf %56, %50 : vector<16x16xf32>
    %c1_43 = arith.constant 1 : index
    %c1_44 = arith.constant 1 : index
    %c0_45 = arith.constant 0 : index
    %c0_46 = arith.constant 0 : index
    %58 = vector.load %arg4[%c1_43, %c1_44, %c0_45, %c0_46] : memref<2x2x16x16xf32, #tpu.memory_space<vmem>>, vector<1x1x16x16xf32>
    %59 = vector.shape_cast %58 : vector<1x1x16x16xf32> to vector<16x16xf32>
    %60 = vector.shape_cast %57 : vector<16x16xf32> to vector<1x1x16x16xf32>
    tpu.vector_store %arg4[%c1_43, %c1_44, %c0_45, %c0_46], %60 {strides = array<i32>} : memref<2x2x16x16xf32, #tpu.memory_space<vmem>>, vector<1x1x16x16xf32>,
    return
  }
  func.func @transform_0(%arg0: i32) -> (i32, i32, i32) {
    %c0_i32 = arith.constant 0 : i32
    %c0_i32_0 = arith.constant 0 : i32
    %c0_i32_1 = arith.constant 0 : i32
    %c0_i32_2 = arith.constant 0 : i32
    return %c0_i32, %c0_i32_0, %c0_i32_1 : i32, i32, i32
  }
  func.func @transform_1(%arg0: i32) -> (i32, i32, i32) {
    %c0_i32 = arith.constant 0 : i32
    %c0_i32_0 = arith.constant 0 : i32
    %c0_i32_1 = arith.constant 0 : i32
    %c0_i32_2 = arith.constant 0 : i32
    return %c0_i32, %c0_i32_0, %c0_i32_1 : i32, i32, i32
  }
  func.func @transform_2(%arg0: i32) -> (i32, i32, i32, i32) {
    %c0_i32 = arith.constant 0 : i32
    %c0_i32_0 = arith.constant 0 : i32
    %c0_i32_1 = arith.constant 0 : i32
    %c0_i32_2 = arith.constant 0 : i32
    return %c0_i32, %arg0, %c0_i32_0, %c0_i32_1 : i32, i32, i32, i32
  }
  func.func @transform_3(%arg0: i32) -> (i32, i32, i32, i32) {
    %c0_i32 = arith.constant 0 : i32
    %c0_i32_0 = arith.constant 0 : i32
    %c0_i32_1 = arith.constant 0 : i32
    %c0_i32_2 = arith.constant 0 : i32
    return %c0_i32, %arg0, %c0_i32_0, %c0_i32_1 : i32, i32, i32, i32
  }
}

</mosaic_0001>

<llo_original>
// kernel: tpu_custom_call.1
$region0: #{tpu_custom_call.1}
  #allocation0 [shape = 'u32[]', space=smem, size = 0x4, offset = 0x4, fixed_abs, tag = 'smem constant byte address 0x4 - core index']
  #allocation1 [shape = 'u32[144,128]{1,0:T(1,128)}', space=vmem, size = 0x12000, scoped, tag = 'internal scratch']
  %s0 = inlined_call_operand.hbm [shape: f32[3,16,16], index: 0, kind: input, shape index: {}]
  %s1 = inlined_call_operand.hbm [shape: f32[3,16,16], index: 1, kind: input, shape index: {}]
  %s2 = inlined_call_operand.hbm [shape: f32[2,2,16,16], index: 2, kind: input, shape index: {}]
  %s3 = inlined_call_operand.hbm [shape: f32[2,2,16,16], index: 3, kind: output, shape index: {}]
  %s4 = sld [smem:[#allocation0]]
  $region34: #{tpu_custom_call.1} parent=0
    _
  %s6 = ssub.s32 1, %s4
  %s7 = scalar_select 0, %s6, %s4
  $region1: #{tpu_custom_call.1} parent=0
    #allocation2 [shape = 'u8[24576]{0}', space=vmem, size = 0x6000, scoped, tag = 'input window, operand 0, single buffered']
    #allocation3 [shape = 's32[1]{0}', space=sflag, size = 0x4, scoped, tag = 'scoped memory for tpu_custom_call.1']
    #allocation4 [shape = 's32[1]{0}', space=sflag, size = 0x4, scoped, tag = 'scoped memory for tpu_custom_call.1']
    #allocation5 [shape = 'u8[24576]{0}', space=vmem, size = 0x6000, scoped, tag = 'input window, operand 1, single buffered']
    #allocation6 [shape = 's32[1]{0}', space=sflag, size = 0x4, scoped, tag = 'scoped memory for tpu_custom_call.1']
    #allocation7 [shape = 'u8[32768]{0}', space=vmem, size = 0x8000, scoped, tag = 'input window, operand 2, single buffered']
    #allocation8 [shape = 'u8[32768]{0}', space=vmem, size = 0x8000, scoped, tag = 'output window, operand 0, single buffered']
    %8 = vsyncpa [#allocation3], 0
    %9 = vsyncpa [#allocation6], 0
    %10 = vsyncpa [#allocation4], 0
    // Predicated region
    $region2: #{tpu_custom_call.1} parent=1 // pred_check
      _
    $region3: #{tpu_custom_call.1} parent=1 // pred_check_branch
      %12 = sbr.rel (0) target = $region5
    $region4: #{tpu_custom_call.1} parent=1 // pred_region
      %s14 = ssub.s32 768, 768
      %15 = vsyncadd [#allocation3], %s14
      %s16 = sshll.u32 [#allocation2], 4
      %s17 = int_to_ptr.vmem [resolvable:$true] %s16
      %22 = dma.hbm_to_vmem [thread:$0]  %s0, 768, %s17, [#allocation3], 128, 128, 8
    $region5: #{tpu_custom_call.1} parent=1 // pred_fallthru
      _
    // Predicated region
    $region6: #{tpu_custom_call.1} parent=1 // pred_check
      _
    $region7: #{tpu_custom_call.1} parent=1 // pred_check_branch
      %24 = sbr.rel (0) target = $region9
    $region8: #{tpu_custom_call.1} parent=1 // pred_region
      %s26 = ssub.s32 768, 768
      %27 = vsyncadd [#allocation6], %s26
      %s28 = sshll.u32 [#allocation5], 4
      %s29 = int_to_ptr.vmem [resolvable:$true] %s28
      %34 = dma.hbm_to_vmem [thread:$0]  %s1, 768, %s29, [#allocation6], 128, 128, 8
    $region9: #{tpu_custom_call.1} parent=1 // pred_fallthru
      _
    // Predicated region
    $region10: #{tpu_custom_call.1} parent=1 // pred_check
      _
    $region11: #{tpu_custom_call.1} parent=1 // pred_check_branch
      %36 = sbr.rel (0) target = $region13
    $region12: #{tpu_custom_call.1} parent=1 // pred_region
      %s38 = ssub.s32 1024, 1024
      %39 = vsyncadd [#allocation6], %s38
      %s40 = sshll.u32 [#allocation7], 4
      %s41 = int_to_ptr.vmem [resolvable:$true] %s40
      %46 = dma.hbm_to_vmem [thread:$0]  %s2, 1024, %s41, [#allocation6], 128, 128, 8
    $region13: #{tpu_custom_call.1} parent=1 // pred_fallthru
      _
    // Predicated region
    $region14: #{tpu_custom_call.1} parent=1 // pred_check
      _
    $region15: #{tpu_custom_call.1} parent=1 // pred_check_branch
      %48 = sbr.rel (0) target = $region17
    $region16: #{tpu_custom_call.1} parent=1 // pred_region
      %49 = dma.done [#allocation3], 768
    $region17: #{tpu_custom_call.1} parent=1 // pred_fallthru
      _
    // Predicated region
    $region18: #{tpu_custom_call.1} parent=1 // pred_check
      _
    $region19: #{tpu_custom_call.1} parent=1 // pred_check_branch
      %51 = sbr.rel (0) target = $region21
    $region20: #{tpu_custom_call.1} parent=1 // pred_region
      %52 = dma.done [#allocation6], 768
    $region21: #{tpu_custom_call.1} parent=1 // pred_fallthru
      _
    // Predicated region
    $region22: #{tpu_custom_call.1} parent=1 // pred_check
      _
    $region23: #{tpu_custom_call.1} parent=1 // pred_check_branch
      %54 = sbr.rel (0) target = $region25
    $region24: #{tpu_custom_call.1} parent=1 // pred_region
      %55 = dma.done [#allocation6], 1024
    $region25: #{tpu_custom_call.1} parent=1 // pred_fallthru
      _
    %v56 = vld [vmem:[#allocation2] sm:$0xff]
    %v57 = vld [vmem:[#allocation2 + $0x8] sm:$0xff]
    %s58 = scalar_lea.vmem [#allocation2], 16
    %v59 = vld [vmem:[%s58] sm:$0xff]
    %v60 = vld [vmem:[%s58 + $0x8] sm:$0xff]
    %s61 = scalar_lea.vmem [#allocation2], 32
    %v62 = vld [vmem:[%s61] sm:$0xff]
    %v63 = vld [vmem:[%s61 + $0x8] sm:$0xff]
    %v64 = vld [vmem:[#allocation5] sm:$0xff]
    %v65 = vld [vmem:[#allocation5 + $0x8] sm:$0xff]
    %s66 = scalar_lea.vmem [#allocation5], 16
    %v67 = vld [vmem:[%s66] sm:$0xff]
    %v68 = vld [vmem:[%s66 + $0x8] sm:$0xff]
    %s69 = scalar_lea.vmem [#allocation5], 32
    %v70 = vld [vmem:[%s69] sm:$0xff]
    %v71 = vld [vmem:[%s69 + $0x8] sm:$0xff]
    %v72 = vld [vmem:[#allocation7] sm:$0xff]
    %v73 = vld [vmem:[#allocation7 + $0x8] sm:$0xff]
    %v74 = vld [vmem:[#allocation7 + $0x10] sm:$0xff]
    %v75 = vld [vmem:[#allocation7 + $0x18] sm:$0xff]
    %s76 = scalar_lea.vmem [#allocation7], 32
    %v77 = vld [vmem:[%s76] sm:$0xff]
    %v78 = vld [vmem:[%s76 + $0x8] sm:$0xff]
    %v79 = vld [vmem:[%s76 + $0x10] sm:$0xff]
    %v80 = vld [vmem:[%s76 + $0x18] sm:$0xff]
    %v81 = vadd.f32 %v72, %v77
    %v82 = vadd.f32 %v73, %v78
    %v83 = vadd.f32 %v74, %v79
    %v84 = vadd.f32 %v75, %v80
    %vm85 = vcmask 130048
    %v87 = vsel %vm85, %v72, 0
    %v90 = vsel %vm85, %v73, 0
    %v93 = vsel %vm85, %v74, 0
    %v96 = vsel %vm85, %v75, 0
    %98 = vmatprep.subr.mxu0 0.0
    %99 = vmatpush1.msra.mxu0 %v64
    %100 = vmatprep.subr.mxu0 0.0
    %101 = vmatpush1.msra.mxu0 %v65
    %102 = vmatprep.subr.mxu0 0.0
    %103 = vmatpush1.msra.mxu0 0.0
    %104 = vmatprep.subr.mxu0 0.0
    %105 = vmatpush1.msra.mxu0 0.0
    %106 = vmatprep.subr.mxu0 0.0
    %107 = vmatpush1.msra.mxu0 0.0
    %108 = vmatprep.subr.mxu0 0.0
    %109 = vmatpush1.msra.mxu0 0.0
    %110 = vmatprep.subr.mxu0 0.0
    %111 = vmatpush1.msra.mxu0 0.0
    %112 = vmatprep.subr.mxu0 0.0
    %113 = vmatpush1.msra.mxu0 0.0
    %114 = vmatprep.subr.mxu0 0.0
    %115 = vmatpush1.msra.mxu0 0.0
    %116 = vmatprep.subr.mxu0 0.0
    %117 = vmatpush1.msra.mxu0 0.0
    %118 = vmatprep.subr.mxu0 0.0
    %119 = vmatpush1.msra.mxu0 0.0
    %120 = vmatprep.subr.mxu0 0.0
    %121 = vmatpush1.msra.mxu0 0.0
    %122 = vmatprep.subr.mxu0 0.0
    %123 = vmatpush1.msra.mxu0 0.0
    %124 = vmatprep.subr.mxu0 0.0
    %125 = vmatpush1.msra.mxu0 0.0
    %126 = vmatprep.subr.mxu0 0.0
    %127 = vmatpush1.msra.mxu0 0.0
    %128 = vmatprep.subr.mxu0 0.0
    %129 = vmatpush1.msra.mxu0 0.0
    %130 = vmatprep.subr.mxu0 0.0
    %131 = vmatpush1.msra.mxu0 0.0
    %132 = vmatprep.subr.mxu0 0.0
    %133 = vmatpush1.msra.mxu0 0.0
    %134 = vmatprep.subr.mxu0 0.0
    %135 = vmatpush1.msra.mxu0 0.0
    %136 = vmatprep.subr.mxu0 0.0
    %137 = vmatpush1.msra.mxu0 0.0
    %138 = vmatprep.subr.mxu0 0.0
    %139 = vmatpush1.msra.mxu0 0.0
    %140 = vmatprep.subr.mxu0 0.0
    %141 = vmatpush1.msra.mxu0 0.0
    %142 = vmatprep.subr.mxu0 0.0
    %143 = vmatpush1.msra.mxu0 0.0
    %144 = vmatprep.subr.mxu0 0.0
    %145 = vmatpush1.msra.mxu0 0.0
    %146 = vmatprep.subr.mxu0 0.0
    %147 = vmatpush1.msra.mxu0 0.0
    %148 = vmatprep.subr.mxu0 0.0
    %149 = vmatpush1.msra.mxu0 0.0
    %150 = vmatprep.subr.mxu0 0.0
    %151 = vmatpush1.msra.mxu0 0.0
    %152 = vmatprep.subr.mxu0 0.0
    %153 = vmatpush1.msra.mxu0 0.0
    %154 = vmatprep.subr.mxu0 0.0
    %155 = vmatpush1.msra.mxu0 0.0
    %156 = vmatprep.subr.mxu0 0.0
    %157 = vmatpush1.msra.mxu0 0.0
    %158 = vmatprep.subr.mxu0 0.0
    %159 = vmatpush1.msra.mxu0 0.0
    %160 = vmatprep.subr.mxu0 0.0
    %161 = vmatpush1.msra.mxu0 0.0
    %162 = vmatprep.mubr.f32.mxu0 0.0
    %163 = vmatmul.mubr.f32.gmra.mrb[0].mxu0 %v87
    %v164 = vpop.f32.mrb[0].mxu0
    %v165 = vadd.f32 0.0, %v164
    %v166 = vpop.f32.mrb[0].mxu0
    %167 = vmatprep.mubr.f32.mxu0 0.0
    %168 = vmatmul.mubr.f32.gmra.mrb[0].mxu0 %v90
    %v169 = vpop.f32.mrb[0].mxu0
    %v170 = vadd.f32 0.0, %v169
    %v171 = vpop.f32.mrb[0].mxu0
    %172 = vmatprep.mubr.f32.mxu0 0.0
    %173 = vmatmul.mubr.f32.gmra.mrb[0].mxu0 %v93
    %v174 = vpop.f32.mrb[0].mxu0
    %v175 = vadd.f32 0.0, %v174
    %v176 = vpop.f32.mrb[0].mxu0
    %177 = vmatprep.mubr.f32.mxu0 0.0
    %178 = vmatmul.mubr.f32.gmra.mrb[0].mxu0 %v96
    %v179 = vpop.f32.mrb[0].mxu0
    %v180 = vadd.f32 0.0, %v179
    %v181 = vpop.f32.mrb[0].mxu0
    %182 = vdwg.mxu0
    %v184 = vsel %vm85, %v77, 0
    %v187 = vsel %vm85, %v78, 0
    %v190 = vsel %vm85, %v79, 0
    %v193 = vsel %vm85, %v80, 0
    %195 = vmatprep.subr.mxu0 0.0
    %196 = vmatpush1.msra.mxu0 %v67
    %197 = vmatprep.subr.mxu0 0.0
    %198 = vmatpush1.msra.mxu0 %v68
    %199 = vmatprep.subr.mxu0 0.0
    %200 = vmatpush1.msra.mxu0 0.0
    %201 = vmatprep.subr.mxu0 0.0
    %202 = vmatpush1.msra.mxu0 0.0
    %203 = vmatprep.subr.mxu0 0.0
    %204 = vmatpush1.msra.mxu0 0.0
    %205 = vmatprep.subr.mxu0 0.0
    %206 = vmatpush1.msra.mxu0 0.0
    %207 = vmatprep.subr.mxu0 0.0
    %208 = vmatpush1.msra.mxu0 0.0
    %209 = vmatprep.subr.mxu0 0.0
    %210 = vmatpush1.msra.mxu0 0.0
    %211 = vmatprep.subr.mxu0 0.0
    %212 = vmatpush1.msra.mxu0 0.0
    %213 = vmatprep.subr.mxu0 0.0
    %214 = vmatpush1.msra.mxu0 0.0
    %215 = vmatprep.subr.mxu0 0.0
    %216 = vmatpush1.msra.mxu0 0.0
    %217 = vmatprep.subr.mxu0 0.0
    %218 = vmatpush1.msra.mxu0 0.0
    %219 = vmatprep.subr.mxu0 0.0
    %220 = vmatpush1.msra.mxu0 0.0
    %221 = vmatprep.subr.mxu0 0.0
    %222 = vmatpush1.msra.mxu0 0.0
    %223 = vmatprep.subr.mxu0 0.0
    %224 = vmatpush1.msra.mxu0 0.0
    %225 = vmatprep.subr.mxu0 0.0
    %226 = vmatpush1.msra.mxu0 0.0
    %227 = vmatprep.subr.mxu0 0.0
    %228 = vmatpush1.msra.mxu0 0.0
    %229 = vmatprep.subr.mxu0 0.0
    %230 = vmatpush1.msra.mxu0 0.0
    %231 = vmatprep.subr.mxu0 0.0
    %232 = vmatpush1.msra.mxu0 0.0
    %233 = vmatprep.subr.mxu0 0.0
    %234 = vmatpush1.msra.mxu0 0.0
    %235 = vmatprep.subr.mxu0 0.0
    %236 = vmatpush1.msra.mxu0 0.0
    %237 = vmatprep.subr.mxu0 0.0
    %238 = vmatpush1.msra.mxu0 0.0
    %239 = vmatprep.subr.mxu0 0.0
    %240 = vmatpush1.msra.mxu0 0.0
    %241 = vmatprep.subr.mxu0 0.0
    %242 = vmatpush1.msra.mxu0 0.0
    %243 = vmatprep.subr.mxu0 0.0
    %244 = vmatpush1.msra.mxu0 0.0
    %245 = vmatprep.subr.mxu0 0.0
    %246 = vmatpush1.msra.mxu0 0.0
    %247 = vmatprep.subr.mxu0 0.0
    %248 = vmatpush1.msra.mxu0 0.0
    %249 = vmatprep.subr.mxu0 0.0
    %250 = vmatpush1.msra.mxu0 0.0
    %251 = vmatprep.subr.mxu0 0.0
    %252 = vmatpush1.msra.mxu0 0.0
    %253 = vmatprep.subr.mxu0 0.0
    %254 = vmatpush1.msra.mxu0 0.0
    %255 = vmatprep.subr.mxu0 0.0
    %256 = vmatpush1.msra.mxu0 0.0
    %257 = vmatprep.subr.mxu0 0.0
    %258 = vmatpush1.msra.mxu0 0.0
    %259 = vmatprep.mubr.f32.mxu0 0.0
    %260 = vmatmul.mubr.f32.gmra.mrb[0].mxu0 %v184
    %v261 = vpop.f32.mrb[0].mxu0
    %v262 = vadd.f32 0.0, %v261
    %v263 = vpop.f32.mrb[0].mxu0
    %264 = vmatprep.mubr.f32.mxu0 0.0
    %265 = vmatmul.mubr.f32.gmra.mrb[0].mxu0 %v187
    %v266 = vpop.f32.mrb[0].mxu0
    %v267 = vadd.f32 0.0, %v266
    %v268 = vpop.f32.mrb[0].mxu0
    %269 = vmatprep.mubr.f32.mxu0 0.0
    %270 = vmatmul.mubr.f32.gmra.mrb[0].mxu0 %v190
    %v271 = vpop.f32.mrb[0].mxu0
    %v272 = vadd.f32 0.0, %v271
    %v273 = vpop.f32.mrb[0].mxu0
    %274 = vmatprep.mubr.f32.mxu0 0.0
    %275 = vmatmul.mubr.f32.gmra.mrb[0].mxu0 %v193
    %v276 = vpop.f32.mrb[0].mxu0
    %v277 = vadd.f32 0.0, %v276
    %v278 = vpop.f32.mrb[0].mxu0
    %279 = vdwg.mxu0
    %v281 = vsel %vm85, %v81, 0
    %v284 = vsel %vm85, %v82, 0
    %v287 = vsel %vm85, %v83, 0
    %v290 = vsel %vm85, %v84, 0
    %292 = vmatprep.subr.mxu0 0.0
    %293 = vmatpush1.msra.mxu0 %v70
    %294 = vmatprep.subr.mxu0 0.0
    %295 = vmatpush1.msra.mxu0 %v71
    %296 = vmatprep.subr.mxu0 0.0
    %297 = vmatpush1.msra.mxu0 0.0
    %298 = vmatprep.subr.mxu0 0.0
    %299 = vmatpush1.msra.mxu0 0.0
    %300 = vmatprep.subr.mxu0 0.0
    %301 = vmatpush1.msra.mxu0 0.0
    %302 = vmatprep.subr.mxu0 0.0
    %303 = vmatpush1.msra.mxu0 0.0
    %304 = vmatprep.subr.mxu0 0.0
    %305 = vmatpush1.msra.mxu0 0.0
    %306 = vmatprep.subr.mxu0 0.0
    %307 = vmatpush1.msra.mxu0 0.0
    %308 = vmatprep.subr.mxu0 0.0
    %309 = vmatpush1.msra.mxu0 0.0
    %310 = vmatprep.subr.mxu0 0.0
    %311 = vmatpush1.msra.mxu0 0.0
    %312 = vmatprep.subr.mxu0 0.0
    %313 = vmatpush1.msra.mxu0 0.0
    %314 = vmatprep.subr.mxu0 0.0
    %315 = vmatpush1.msra.mxu0 0.0
    %316 = vmatprep.subr.mxu0 0.0
    %317 = vmatpush1.msra.mxu0 0.0
    %318 = vmatprep.subr.mxu0 0.0
    %319 = vmatpush1.msra.mxu0 0.0
    %320 = vmatprep.subr.mxu0 0.0
    %321 = vmatpush1.msra.mxu0 0.0
    %322 = vmatprep.subr.mxu0 0.0
    %323 = vmatpush1.msra.mxu0 0.0
    %324 = vmatprep.subr.mxu0 0.0
    %325 = vmatpush1.msra.mxu0 0.0
    %326 = vmatprep.subr.mxu0 0.0
    %327 = vmatpush1.msra.mxu0 0.0
    %328 = vmatprep.subr.mxu0 0.0
    %329 = vmatpush1.msra.mxu0 0.0
    %330 = vmatprep.subr.mxu0 0.0
    %331 = vmatpush1.msra.mxu0 0.0
    %332 = vmatprep.subr.mxu0 0.0
    %333 = vmatpush1.msra.mxu0 0.0
    %334 = vmatprep.subr.mxu0 0.0
    %335 = vmatpush1.msra.mxu0 0.0
    %336 = vmatprep.subr.mxu0 0.0
    %337 = vmatpush1.msra.mxu0 0.0
    %338 = vmatprep.subr.mxu0 0.0
    %339 = vmatpush1.msra.mxu0 0.0
    %340 = vmatprep.subr.mxu0 0.0
    %341 = vmatpush1.msra.mxu0 0.0
    %342 = vmatprep.subr.mxu0 0.0
    %343 = vmatpush1.msra.mxu0 0.0
    %344 = vmatprep.subr.mxu0 0.0
    %345 = vmatpush1.msra.mxu0 0.0
    %346 = vmatprep.subr.mxu0 0.0
    %347 = vmatpush1.msra.mxu0 0.0
    %348 = vmatprep.subr.mxu0 0.0
    %349 = vmatpush1.msra.mxu0 0.0
    %350 = vmatprep.subr.mxu0 0.0
    %351 = vmatpush1.msra.mxu0 0.0
    %352 = vmatprep.subr.mxu0 0.0
    %353 = vmatpush1.msra.mxu0 0.0
    %354 = vmatprep.subr.mxu0 0.0
    %355 = vmatpush1.msra.mxu0 0.0
    %356 = vmatprep.mubr.f32.mxu0 0.0
    %357 = vmatmul.mubr.f32.gmra.mrb[0].mxu0 %v281
    %v358 = vpop.f32.mrb[0].mxu0
    %v359 = vadd.f32 0.0, %v358
    %v360 = vpop.f32.mrb[0].mxu0
    %361 = vmatprep.mubr.f32.mxu0 0.0
    %362 = vmatmul.mubr.f32.gmra.mrb[0].mxu0 %v284
    %v363 = vpop.f32.mrb[0].mxu0
    %v364 = vadd.f32 0.0, %v363
    %v365 = vpop.f32.mrb[0].mxu0
    %366 = vmatprep.mubr.f32.mxu0 0.0
    %367 = vmatmul.mubr.f32.gmra.mrb[0].mxu0 %v287
    %v368 = vpop.f32.mrb[0].mxu0
    %v369 = vadd.f32 0.0, %v368
    %v370 = vpop.f32.mrb[0].mxu0
    %371 = vmatprep.mubr.f32.mxu0 0.0
    %372 = vmatmul.mubr.f32.gmra.mrb[0].mxu0 %v290
    %v373 = vpop.f32.mrb[0].mxu0
    %v374 = vadd.f32 0.0, %v373
    %v375 = vpop.f32.mrb[0].mxu0
    %376 = vdwg.mxu0
    %v377 = vsub.f32 %v165, %v262
    %v378 = vsub.f32 %v170, %v267
    %v379 = vsub.f32 %v175, %v272
    %v380 = vsub.f32 %v180, %v277
    %v381 = vsub.f32 %v359, %v165
    %v382 = vsub.f32 %v364, %v170
    %v383 = vsub.f32 %v369, %v175
    %v384 = vsub.f32 %v374, %v180
    %v385 = vsub.f32 %v381, %v262
    %v386 = vsub.f32 %v382, %v267
    %v387 = vsub.f32 %v383, %v272
    %v388 = vsub.f32 %v384, %v277
    %v389 = vadd.f32 %v377, %v385
    %v390 = vadd.f32 %v378, %v386
    %v392 = vsel %vm85, %v56, 0
    %v395 = vsel %vm85, %v57, 0
    %397 = vmatprep.subr.mxu0 0.0
    %398 = vmatpush1.msra.mxu0 %v377
    %399 = vmatprep.subr.mxu0 0.0
    %400 = vmatpush1.msra.mxu0 %v378
    %401 = vmatprep.subr.mxu0 0.0
    %402 = vmatpush1.msra.mxu0 0.0
    %403 = vmatprep.subr.mxu0 0.0
    %404 = vmatpush1.msra.mxu0 0.0
    %405 = vmatprep.subr.mxu0 0.0
    %406 = vmatpush1.msra.mxu0 0.0
    %407 = vmatprep.subr.mxu0 0.0
    %408 = vmatpush1.msra.mxu0 0.0
    %409 = vmatprep.subr.mxu0 0.0
    %410 = vmatpush1.msra.mxu0 0.0
    %411 = vmatprep.subr.mxu0 0.0
    %412 = vmatpush1.msra.mxu0 0.0
    %413 = vmatprep.subr.mxu0 0.0
    %414 = vmatpush1.msra.mxu0 0.0
    %415 = vmatprep.subr.mxu0 0.0
    %416 = vmatpush1.msra.mxu0 0.0
    %417 = vmatprep.subr.mxu0 0.0
    %418 = vmatpush1.msra.mxu0 0.0
    %419 = vmatprep.subr.mxu0 0.0
    %420 = vmatpush1.msra.mxu0 0.0
    %421 = vmatprep.subr.mxu0 0.0
    %422 = vmatpush1.msra.mxu0 0.0
    %423 = vmatprep.subr.mxu0 0.0
    %424 = vmatpush1.msra.mxu0 0.0
    %425 = vmatprep.subr.mxu0 0.0
    %426 = vmatpush1.msra.mxu0 0.0
    %427 = vmatprep.subr.mxu0 0.0
    %428 = vmatpush1.msra.mxu0 0.0
    %429 = vmatprep.subr.mxu0 0.0
    %430 = vmatpush1.msra.mxu0 0.0
    %431 = vmatprep.subr.mxu0 0.0
    %432 = vmatpush1.msra.mxu0 0.0
    %433 = vmatprep.subr.mxu0 0.0
    %434 = vmatpush1.msra.mxu0 0.0
    %435 = vmatprep.subr.mxu0 0.0
    %436 = vmatpush1.msra.mxu0 0.0
    %437 = vmatprep.subr.mxu0 0.0
    %438 = vmatpush1.msra.mxu0 0.0
    %439 = vmatprep.subr.mxu0 0.0
    %440 = vmatpush1.msra.mxu0 0.0
    %441 = vmatprep.subr.mxu0 0.0
    %442 = vmatpush1.msra.mxu0 0.0
    %443 = vmatprep.subr.mxu0 0.0
    %444 = vmatpush1.msra.mxu0 0.0
    %445 = vmatprep.subr.mxu0 0.0
    %446 = vmatpush1.msra.mxu0 0.0
    %447 = vmatprep.subr.mxu0 0.0
    %448 = vmatpush1.msra.mxu0 0.0
    %449 = vmatprep.subr.mxu0 0.0
    %450 = vmatpush1.msra.mxu0 0.0
    %451 = vmatprep.subr.mxu0 0.0
    %452 = vmatpush1.msra.mxu0 0.0
    %453 = vmatprep.subr.mxu0 0.0
    %454 = vmatpush1.msra.mxu0 0.0
    %455 = vmatprep.subr.mxu0 0.0
    %456 = vmatpush1.msra.mxu0 0.0
    %457 = vmatprep.subr.mxu0 0.0
    %458 = vmatpush1.msra.mxu0 0.0
    %459 = vmatprep.subr.mxu0 0.0
    %460 = vmatpush1.msra.mxu0 0.0
    %461 = vmatprep.mubr.f32.mxu0 0.0
    %462 = vmatmul.mubr.f32.gmra.mrb[0].mxu0 %v392
    %v463 = vpop.f32.mrb[0].mxu0
    %v464 = vadd.f32 0.0, %v463
    %v465 = vpop.f32.mrb[0].mxu0
    %466 = vmatprep.mubr.f32.mxu0 0.0
    %467 = vmatmul.mubr.f32.gmra.mrb[0].mxu0 %v395
    %v468 = vpop.f32.mrb[0].mxu0
    %v469 = vadd.f32 0.0, %v468
    %v470 = vpop.f32.mrb[0].mxu0
    %471 = vdwg.mxu0
    %v473 = vsel %vm85, %v59, 0
    %v476 = vsel %vm85, %v60, 0
    %478 = vmatprep.subr.mxu0 0.0
    %479 = vmatpush1.msra.mxu0 %v385
    %480 = vmatprep.subr.mxu0 0.0
    %481 = vmatpush1.msra.mxu0 %v386
    %482 = vmatprep.subr.mxu0 0.0
    %483 = vmatpush1.msra.mxu0 0.0
    %484 = vmatprep.subr.mxu0 0.0
    %485 = vmatpush1.msra.mxu0 0.0
    %486 = vmatprep.subr.mxu0 0.0
    %487 = vmatpush1.msra.mxu0 0.0
    %488 = vmatprep.subr.mxu0 0.0
    %489 = vmatpush1.msra.mxu0 0.0
    %490 = vmatprep.subr.mxu0 0.0
    %491 = vmatpush1.msra.mxu0 0.0
    %492 = vmatprep.subr.mxu0 0.0
    %493 = vmatpush1.msra.mxu0 0.0
    %494 = vmatprep.subr.mxu0 0.0
    %495 = vmatpush1.msra.mxu0 0.0
    %496 = vmatprep.subr.mxu0 0.0
    %497 = vmatpush1.msra.mxu0 0.0
    %498 = vmatprep.subr.mxu0 0.0
    %499 = vmatpush1.msra.mxu0 0.0
    %500 = vmatprep.subr.mxu0 0.0
    %501 = vmatpush1.msra.mxu0 0.0
    %502 = vmatprep.subr.mxu0 0.0
    %503 = vmatpush1.msra.mxu0 0.0
    %504 = vmatprep.subr.mxu0 0.0
    %505 = vmatpush1.msra.mxu0 0.0
    %506 = vmatprep.subr.mxu0 0.0
    %507 = vmatpush1.msra.mxu0 0.0
    %508 = vmatprep.subr.mxu0 0.0
    %509 = vmatpush1.msra.mxu0 0.0
    %510 = vmatprep.subr.mxu0 0.0
    %511 = vmatpush1.msra.mxu0 0.0
    %512 = vmatprep.subr.mxu0 0.0
    %513 = vmatpush1.msra.mxu0 0.0
    %514 = vmatprep.subr.mxu0 0.0
    %515 = vmatpush1.msra.mxu0 0.0
    %516 = vmatprep.subr.mxu0 0.0
    %517 = vmatpush1.msra.mxu0 0.0
    %518 = vmatprep.subr.mxu0 0.0
    %519 = vmatpush1.msra.mxu0 0.0
    %520 = vmatprep.subr.mxu0 0.0
    %521 = vmatpush1.msra.mxu0 0.0
    %522 = vmatprep.subr.mxu0 0.0
    %523 = vmatpush1.msra.mxu0 0.0
    %524 = vmatprep.subr.mxu0 0.0
    %525 = vmatpush1.msra.mxu0 0.0
    %526 = vmatprep.subr.mxu0 0.0
    %527 = vmatpush1.msra.mxu0 0.0
    %528 = vmatprep.subr.mxu0 0.0
    %529 = vmatpush1.msra.mxu0 0.0
    %530 = vmatprep.subr.mxu0 0.0
    %531 = vmatpush1.msra.mxu0 0.0
    %532 = vmatprep.subr.mxu0 0.0
    %533 = vmatpush1.msra.mxu0 0.0
    %534 = vmatprep.subr.mxu0 0.0
    %535 = vmatpush1.msra.mxu0 0.0
    %536 = vmatprep.subr.mxu0 0.0
    %537 = vmatpush1.msra.mxu0 0.0
    %538 = vmatprep.subr.mxu0 0.0
    %539 = vmatpush1.msra.mxu0 0.0
    %540 = vmatprep.subr.mxu0 0.0
    %541 = vmatpush1.msra.mxu0 0.0
    %542 = vmatprep.mubr.f32.mxu0 0.0
    %543 = vmatmul.mubr.f32.gmra.mrb[0].mxu0 %v473
    %v544 = vpop.f32.mrb[0].mxu0
    %v545 = vadd.f32 0.0, %v544
    %v546 = vpop.f32.mrb[0].mxu0
    %547 = vmatprep.mubr.f32.mxu0 0.0
    %548 = vmatmul.mubr.f32.gmra.mrb[0].mxu0 %v476
    %v549 = vpop.f32.mrb[0].mxu0
    %v550 = vadd.f32 0.0, %v549
    %v551 = vpop.f32.mrb[0].mxu0
    %552 = vdwg.mxu0
    %v554 = vsel %vm85, %v62, 0
    %v557 = vsel %vm85, %v63, 0
    %559 = vmatprep.subr.mxu0 0.0
    %560 = vmatpush1.msra.mxu0 %v389
    %561 = vmatprep.subr.mxu0 0.0
    %562 = vmatpush1.msra.mxu0 %v390
    %563 = vmatprep.subr.mxu0 0.0
    %564 = vmatpush1.msra.mxu0 0.0
    %565 = vmatprep.subr.mxu0 0.0
    %566 = vmatpush1.msra.mxu0 0.0
    %567 = vmatprep.subr.mxu0 0.0
    %568 = vmatpush1.msra.mxu0 0.0
    %569 = vmatprep.subr.mxu0 0.0
    %570 = vmatpush1.msra.mxu0 0.0
    %571 = vmatprep.subr.mxu0 0.0
    %572 = vmatpush1.msra.mxu0 0.0
    %573 = vmatprep.subr.mxu0 0.0
    %574 = vmatpush1.msra.mxu0 0.0
    %575 = vmatprep.subr.mxu0 0.0
    %576 = vmatpush1.msra.mxu0 0.0
    %577 = vmatprep.subr.mxu0 0.0
    %578 = vmatpush1.msra.mxu0 0.0
    %579 = vmatprep.subr.mxu0 0.0
    %580 = vmatpush1.msra.mxu0 0.0
    %581 = vmatprep.subr.mxu0 0.0
    %582 = vmatpush1.msra.mxu0 0.0
    %583 = vmatprep.subr.mxu0 0.0
    %584 = vmatpush1.msra.mxu0 0.0
    %585 = vmatprep.subr.mxu0 0.0
    %586 = vmatpush1.msra.mxu0 0.0
    %587 = vmatprep.subr.mxu0 0.0
    %588 = vmatpush1.msra.mxu0 0.0
    %589 = vmatprep.subr.mxu0 0.0
    %590 = vmatpush1.msra.mxu0 0.0
    %591 = vmatprep.subr.mxu0 0.0
    %592 = vmatpush1.msra.mxu0 0.0
    %593 = vmatprep.subr.mxu0 0.0
    %594 = vmatpush1.msra.mxu0 0.0
    %595 = vmatprep.subr.mxu0 0.0
    %596 = vmatpush1.msra.mxu0 0.0
    %597 = vmatprep.subr.mxu0 0.0
    %598 = vmatpush1.msra.mxu0 0.0
    %599 = vmatprep.subr.mxu0 0.0
    %600 = vmatpush1.msra.mxu0 0.0
    %601 = vmatprep.subr.mxu0 0.0
    %602 = vmatpush1.msra.mxu0 0.0
    %603 = vmatprep.subr.mxu0 0.0
    %604 = vmatpush1.msra.mxu0 0.0
    %605 = vmatprep.subr.mxu0 0.0
    %606 = vmatpush1.msra.mxu0 0.0
    %607 = vmatprep.subr.mxu0 0.0
    %608 = vmatpush1.msra.mxu0 0.0
    %609 = vmatprep.subr.mxu0 0.0
    %610 = vmatpush1.msra.mxu0 0.0
    %611 = vmatprep.subr.mxu0 0.0
    %612 = vmatpush1.msra.mxu0 0.0
    %613 = vmatprep.subr.mxu0 0.0
    %614 = vmatpush1.msra.mxu0 0.0
    %615 = vmatprep.subr.mxu0 0.0
    %616 = vmatpush1.msra.mxu0 0.0
    %617 = vmatprep.subr.mxu0 0.0
    %618 = vmatpush1.msra.mxu0 0.0
    %619 = vmatprep.subr.mxu0 0.0
    %620 = vmatpush1.msra.mxu0 0.0
    %621 = vmatprep.subr.mxu0 0.0
    %622 = vmatpush1.msra.mxu0 0.0
    %623 = vmatprep.mubr.f32.mxu0 0.0
    %624 = vmatmul.mubr.f32.gmra.mrb[0].mxu0 %v554
    %v625 = vpop.f32.mrb[0].mxu0
    %v626 = vadd.f32 0.0, %v625
    %v627 = vpop.f32.mrb[0].mxu0
    %628 = vmatprep.mubr.f32.mxu0 0.0
    %629 = vmatmul.mubr.f32.gmra.mrb[0].mxu0 %v557
    %v630 = vpop.f32.mrb[0].mxu0
    %v631 = vadd.f32 0.0, %v630
    %v632 = vpop.f32.mrb[0].mxu0
    %633 = vdwg.mxu0
    %v634 = vsub.f32 %v464, %v545
    %v635 = vsub.f32 %v469, %v550
    %636 = vst.msk [vmem:[#allocation8] sm:$0xff] %vm85, %v634
    %637 = vst.msk [vmem:[#allocation8 + $0x8] sm:$0xff] %vm85, %v635
    %v638 = vsub.f32 %v626, %v464
    %v639 = vsub.f32 %v631, %v469
    %v640 = vsub.f32 %v638, %v545
    %v641 = vsub.f32 %v639, %v550
    %s642 = scalar_lea.vmem [#allocation8], 32
    %643 = vst.msk [vmem:[%s642] sm:$0xff] %vm85, %v640
    %644 = vst.msk [vmem:[%s642 + $0x8] sm:$0xff] %vm85, %v641
    %v645 = vadd.f32 %v379, %v387
    %v646 = vadd.f32 %v380, %v388
    %647 = vmatprep.subr.mxu0 0.0
    %648 = vmatpush1.msra.mxu0 %v379
    %649 = vmatprep.subr.mxu0 0.0
    %650 = vmatpush1.msra.mxu0 %v380
    %651 = vmatprep.subr.mxu0 0.0
    %652 = vmatpush1.msra.mxu0 0.0
    %653 = vmatprep.subr.mxu0 0.0
    %654 = vmatpush1.msra.mxu0 0.0
    %655 = vmatprep.subr.mxu0 0.0
    %656 = vmatpush1.msra.mxu0 0.0
    %657 = vmatprep.subr.mxu0 0.0
    %658 = vmatpush1.msra.mxu0 0.0
    %659 = vmatprep.subr.mxu0 0.0
    %660 = vmatpush1.msra.mxu0 0.0
    %661 = vmatprep.subr.mxu0 0.0
    %662 = vmatpush1.msra.mxu0 0.0
    %663 = vmatprep.subr.mxu0 0.0
    %664 = vmatpush1.msra.mxu0 0.0
    %665 = vmatprep.subr.mxu0 0.0
    %666 = vmatpush1.msra.mxu0 0.0
    %667 = vmatprep.subr.mxu0 0.0
    %668 = vmatpush1.msra.mxu0 0.0
    %669 = vmatprep.subr.mxu0 0.0
    %670 = vmatpush1.msra.mxu0 0.0
    %671 = vmatprep.subr.mxu0 0.0
    %672 = vmatpush1.msra.mxu0 0.0
    %673 = vmatprep.subr.mxu0 0.0
    %674 = vmatpush1.msra.mxu0 0.0
    %675 = vmatprep.subr.mxu0 0.0
    %676 = vmatpush1.msra.mxu0 0.0
    %677 = vmatprep.subr.mxu0 0.0
    %678 = vmatpush1.msra.mxu0 0.0
    %679 = vmatprep.subr.mxu0 0.0
    %680 = vmatpush1.msra.mxu0 0.0
    %681 = vmatprep.subr.mxu0 0.0
    %682 = vmatpush1.msra.mxu0 0.0
    %683 = vmatprep.subr.mxu0 0.0
    %684 = vmatpush1.msra.mxu0 0.0
    %685 = vmatprep.subr.mxu0 0.0
    %686 = vmatpush1.msra.mxu0 0.0
    %687 = vmatprep.subr.mxu0 0.0
    %688 = vmatpush1.msra.mxu0 0.0
    %689 = vmatprep.subr.mxu0 0.0
    %690 = vmatpush1.msra.mxu0 0.0
    %691 = vmatprep.subr.mxu0 0.0
    %692 = vmatpush1.msra.mxu0 0.0
    %693 = vmatprep.subr.mxu0 0.0
    %694 = vmatpush1.msra.mxu0 0.0
    %695 = vmatprep.subr.mxu0 0.0
    %696 = vmatpush1.msra.mxu0 0.0
    %697 = vmatprep.subr.mxu0 0.0
    %698 = vmatpush1.msra.mxu0 0.0
    %699 = vmatprep.subr.mxu0 0.0
    %700 = vmatpush1.msra.mxu0 0.0
    %701 = vmatprep.subr.mxu0 0.0
    %702 = vmatpush1.msra.mxu0 0.0
    %703 = vmatprep.subr.mxu0 0.0
    %704 = vmatpush1.msra.mxu0 0.0
    %705 = vmatprep.subr.mxu0 0.0
    %706 = vmatpush1.msra.mxu0 0.0
    %707 = vmatprep.subr.mxu0 0.0
    %708 = vmatpush1.msra.mxu0 0.0
    %709 = vmatprep.subr.mxu0 0.0
    %710 = vmatpush1.msra.mxu0 0.0
    %711 = vmatprep.mubr.f32.mxu0 0.0
    %712 = vmatmul.mubr.f32.gmra.mrb[0].mxu0 %v392
    %v713 = vpop.f32.mrb[0].mxu0
    %v714 = vadd.f32 0.0, %v713
    %v715 = vpop.f32.mrb[0].mxu0
    %716 = vmatprep.mubr.f32.mxu0 0.0
    %717 = vmatmul.mubr.f32.gmra.mrb[0].mxu0 %v395
    %v718 = vpop.f32.mrb[0].mxu0
    %v719 = vadd.f32 0.0, %v718
    %v720 = vpop.f32.mrb[0].mxu0
    %721 = vdwg.mxu0
    %722 = vmatprep.subr.mxu0 0.0
    %723 = vmatpush1.msra.mxu0 %v387
    %724 = vmatprep.subr.mxu0 0.0
    %725 = vmatpush1.msra.mxu0 %v388
    %726 = vmatprep.subr.mxu0 0.0
    %727 = vmatpush1.msra.mxu0 0.0
    %728 = vmatprep.subr.mxu0 0.0
    %729 = vmatpush1.msra.mxu0 0.0
    %730 = vmatprep.subr.mxu0 0.0
    %731 = vmatpush1.msra.mxu0 0.0
    %732 = vmatprep.subr.mxu0 0.0
    %733 = vmatpush1.msra.mxu0 0.0
    %734 = vmatprep.subr.mxu0 0.0
    %735 = vmatpush1.msra.mxu0 0.0
    %736 = vmatprep.subr.mxu0 0.0
    %737 = vmatpush1.msra.mxu0 0.0
    %738 = vmatprep.subr.mxu0 0.0
    %739 = vmatpush1.msra.mxu0 0.0
    %740 = vmatprep.subr.mxu0 0.0
    %741 = vmatpush1.msra.mxu0 0.0
    %742 = vmatprep.subr.mxu0 0.0
    %743 = vmatpush1.msra.mxu0 0.0
    %744 = vmatprep.subr.mxu0 0.0
    %745 = vmatpush1.msra.mxu0 0.0
    %746 = vmatprep.subr.mxu0 0.0
    %747 = vmatpush1.msra.mxu0 0.0
    %748 = vmatprep.subr.mxu0 0.0
    %749 = vmatpush1.msra.mxu0 0.0
    %750 = vmatprep.subr.mxu0 0.0
    %751 = vmatpush1.msra.mxu0 0.0
    %752 = vmatprep.subr.mxu0 0.0
    %753 = vmatpush1.msra.mxu0 0.0
    %754 = vmatprep.subr.mxu0 0.0
    %755 = vmatpush1.msra.mxu0 0.0
    %756 = vmatprep.subr.mxu0 0.0
    %757 = vmatpush1.msra.mxu0 0.0
    %758 = vmatprep.subr.mxu0 0.0
    %759 = vmatpush1.msra.mxu0 0.0
    %760 = vmatprep.subr.mxu0 0.0
    %761 = vmatpush1.msra.mxu0 0.0
    %762 = vmatprep.subr.mxu0 0.0
    %763 = vmatpush1.msra.mxu0 0.0
    %764 = vmatprep.subr.mxu0 0.0
    %765 = vmatpush1.msra.mxu0 0.0
    %766 = vmatprep.subr.mxu0 0.0
    %767 = vmatpush1.msra.mxu0 0.0
    %768 = vmatprep.subr.mxu0 0.0
    %769 = vmatpush1.msra.mxu0 0.0
    %770 = vmatprep.subr.mxu0 0.0
    %771 = vmatpush1.msra.mxu0 0.0
    %772 = vmatprep.subr.mxu0 0.0
    %773 = vmatpush1.msra.mxu0 0.0
    %774 = vmatprep.subr.mxu0 0.0
    %775 = vmatpush1.msra.mxu0 0.0
    %776 = vmatprep.subr.mxu0 0.0
    %777 = vmatpush1.msra.mxu0 0.0
    %778 = vmatprep.subr.mxu0 0.0
    %779 = vmatpush1.msra.mxu0 0.0
    %780 = vmatprep.subr.mxu0 0.0
    %781 = vmatpush1.msra.mxu0 0.0
    %782 = vmatprep.subr.mxu0 0.0
    %783 = vmatpush1.msra.mxu0 0.0
    %784 = vmatprep.subr.mxu0 0.0
    %785 = vmatpush1.msra.mxu0 0.0
    %786 = vmatprep.mubr.f32.mxu0 0.0
    %787 = vmatmul.mubr.f32.gmra.mrb[0].mxu0 %v473
    %v788 = vpop.f32.mrb[0].mxu0
    %v789 = vadd.f32 0.0, %v788
    %v790 = vpop.f32.mrb[0].mxu0
    %791 = vmatprep.mubr.f32.mxu0 0.0
    %792 = vmatmul.mubr.f32.gmra.mrb[0].mxu0 %v476
    %v793 = vpop.f32.mrb[0].mxu0
    %v794 = vadd.f32 0.0, %v793
    %v795 = vpop.f32.mrb[0].mxu0
    %796 = vdwg.mxu0
    %797 = vmatprep.subr.mxu0 0.0
    %798 = vmatpush1.msra.mxu0 %v645
    %799 = vmatprep.subr.mxu0 0.0
    %800 = vmatpush1.msra.mxu0 %v646
    %801 = vmatprep.subr.mxu0 0.0
    %802 = vmatpush1.msra.mxu0 0.0
    %803 = vmatprep.subr.mxu0 0.0
    %804 = vmatpush1.msra.mxu0 0.0
    %805 = vmatprep.subr.mxu0 0.0
    %806 = vmatpush1.msra.mxu0 0.0
    %807 = vmatprep.subr.mxu0 0.0
    %808 = vmatpush1.msra.mxu0 0.0
    %809 = vmatprep.subr.mxu0 0.0
    %810 = vmatpush1.msra.mxu0 0.0
    %811 = vmatprep.subr.mxu0 0.0
    %812 = vmatpush1.msra.mxu0 0.0
    %813 = vmatprep.subr.mxu0 0.0
    %814 = vmatpush1.msra.mxu0 0.0
    %815 = vmatprep.subr.mxu0 0.0
    %816 = vmatpush1.msra.mxu0 0.0
    %817 = vmatprep.subr.mxu0 0.0
    %818 = vmatpush1.msra.mxu0 0.0
    %819 = vmatprep.subr.mxu0 0.0
    %820 = vmatpush1.msra.mxu0 0.0
    %821 = vmatprep.subr.mxu0 0.0
    %822 = vmatpush1.msra.mxu0 0.0
    %823 = vmatprep.subr.mxu0 0.0
    %824 = vmatpush1.msra.mxu0 0.0
    %825 = vmatprep.subr.mxu0 0.0
    %826 = vmatpush1.msra.mxu0 0.0
    %827 = vmatprep.subr.mxu0 0.0
    %828 = vmatpush1.msra.mxu0 0.0
    %829 = vmatprep.subr.mxu0 0.0
    %830 = vmatpush1.msra.mxu0 0.0
    %831 = vmatprep.subr.mxu0 0.0
    %832 = vmatpush1.msra.mxu0 0.0
    %833 = vmatprep.subr.mxu0 0.0
    %834 = vmatpush1.msra.mxu0 0.0
    %835 = vmatprep.subr.mxu0 0.0
    %836 = vmatpush1.msra.mxu0 0.0
    %837 = vmatprep.subr.mxu0 0.0
    %838 = vmatpush1.msra.mxu0 0.0
    %839 = vmatprep.subr.mxu0 0.0
    %840 = vmatpush1.msra.mxu0 0.0
    %841 = vmatprep.subr.mxu0 0.0
    %842 = vmatpush1.msra.mxu0 0.0
    %843 = vmatprep.subr.mxu0 0.0
    %844 = vmatpush1.msra.mxu0 0.0
    %845 = vmatprep.subr.mxu0 0.0
    %846 = vmatpush1.msra.mxu0 0.0
    %847 = vmatprep.subr.mxu0 0.0
    %848 = vmatpush1.msra.mxu0 0.0
    %849 = vmatprep.subr.mxu0 0.0
    %850 = vmatpush1.msra.mxu0 0.0
    %851 = vmatprep.subr.mxu0 0.0
    %852 = vmatpush1.msra.mxu0 0.0
    %853 = vmatprep.subr.mxu0 0.0
    %854 = vmatpush1.msra.mxu0 0.0
    %855 = vmatprep.subr.mxu0 0.0
    %856 = vmatpush1.msra.mxu0 0.0
    %857 = vmatprep.subr.mxu0 0.0
    %858 = vmatpush1.msra.mxu0 0.0
    %859 = vmatprep.subr.mxu0 0.0
    %860 = vmatpush1.msra.mxu0 0.0
    %861 = vmatprep.mubr.f32.mxu0 0.0
    %862 = vmatmul.mubr.f32.gmra.mrb[0].mxu0 %v554
    %v863 = vpop.f32.mrb[0].mxu0
    %v864 = vadd.f32 0.0, %v863
    %v865 = vpop.f32.mrb[0].mxu0
    %866 = vmatprep.mubr.f32.mxu0 0.0
    %867 = vmatmul.mubr.f32.gmra.mrb[0].mxu0 %v557
    %v868 = vpop.f32.mrb[0].mxu0
    %v869 = vadd.f32 0.0, %v868
    %v870 = vpop.f32.mrb[0].mxu0
    %871 = vdwg.mxu0
    %v872 = vsub.f32 %v714, %v789
    %v873 = vsub.f32 %v719, %v794
    %s874 = scalar_lea.vmem [#allocation8], 16
    %875 = vst.msk [vmem:[%s874] sm:$0xff] %vm85, %v872
    %876 = vst.msk [vmem:[%s874 + $0x8] sm:$0xff] %vm85, %v873
    %v877 = vsub.f32 %v864, %v714
    %v878 = vsub.f32 %v869, %v719
    %v879 = vsub.f32 %v877, %v789
    %v880 = vsub.f32 %v878, %v794
    %s881 = scalar_lea.vmem [#allocation8], 48
    %882 = vst.msk [vmem:[%s881] sm:$0xff] %vm85, %v879
    %883 = vst.msk [vmem:[%s881 + $0x8] sm:$0xff] %vm85, %v880
    // Predicated region
    $region26: #{tpu_custom_call.1} parent=1 // pred_check
      _
    $region27: #{tpu_custom_call.1} parent=1 // pred_check_branch
      %885 = sbr.rel (0) target = $region29
    $region28: #{tpu_custom_call.1} parent=1 // pred_region
      %s887 = ssub.s32 1024, 1024
      %888 = vsyncadd [#allocation4], %s887
      %s889 = sshll.u32 [#allocation8], 4
      %s890 = int_to_ptr.vmem [resolvable:$true] %s889
      %895 = dma.vmem_to_hbm [thread:$0]  %s890, 1024, %s3, [#allocation4], 128, 128, 8
    $region29: #{tpu_custom_call.1} parent=1 // pred_fallthru
      _
    // Predicated region
    $region30: #{tpu_custom_call.1} parent=1 // pred_check
      _
    $region31: #{tpu_custom_call.1} parent=1 // pred_check_branch
      %897 = sbr.rel (0) target = $region33
    $region32: #{tpu_custom_call.1} parent=1 // pred_region
      %898 = dma.done [#allocation4], 1024
    $region33: #{tpu_custom_call.1} parent=1 // pred_fallthru
      _
    %899 = vsyncpa [#allocation3], 1
    %900 = vsyncpa [#allocation6], 1
    %901 = vsyncpa [#allocation4], 1

</llo_original>
